<compile_context>
chip_gen: v7x
topology: tpu7x:2x2x1
jax: 0.10.0
libtpu: 0.0.40
codegen_flags: <defaults>
</compile_context>

<pallas_src>
import math

import jax
import jax.numpy as jnp
from jax.experimental import pallas as pl
from jax.experimental.pallas import tpu as pltpu


# ----------------------------------------------------------------------------
# helpers
# ----------------------------------------------------------------------------
def _round_up(x, m):
    return (x + m - 1) // m * m


def _pad_cast(a, rows, cols, dtype):
    r, c = a.shape
    if (r, c) != (rows, cols):
        a = jnp.pad(a, ((0, rows - r), (0, cols - c)))
    return a.astype(dtype)


def _vmem_cap():
    """Usable VMEM on this chip (with headroom); conservative v7x fallback."""
    try:
        return int(pltpu.get_tpu_info().vmem_capacity_bytes) - (8 << 20)
    except Exception:
        return 56 << 20


def _vmem_budget(bm, d0, d1, d2, d3, weight_bufs=1):
    """Rough VMEM bytes needed by the fused kernel for a given row block."""
    weights = weight_bufs * 2 * (d0 * d1 + d1 * d2 + d2 * d3)   # bf16 weights
    biases = weight_bufs * 4 * (d1 + d2 + d3)                   # f32 biases
    io = 2 * bm * d0 * 2 + 2 * bm * d3 * 4                      # x (bf16) + out (f32), dbl-buf
    interm = bm * (d1 + d2) * 6                                 # f32 h + bf16 cast copies
    return int((weights + biases + io + interm) * 1.25) + (8 << 20)


def _choose_block_m(m, d0, d1, d2, d3, cap):
    """Row block: multiple of 16 (bf16 sublane packing)."""
    if m >= 1024:
        bm = 512                      # big tiles: ~85% of HBM roofline on v6e
    elif m >= 512:
        bm = 256                      # 2+ steps, each still a full MXU pass
    else:
        bm = _round_up(max(m, 1), 16)  # single step; splitting small M loses
    # shrink if the VMEM budget is exceeded (keeps multiples of 16)
    while bm > 16 and _vmem_budget(bm, d0, d1, d2, d3) > cap:
        bm = max(16, _round_up(bm // 2, 16))
    return bm


# ----------------------------------------------------------------------------
# Pallas kernel: one grid step == one block of rows, all three layers fused
# ----------------------------------------------------------------------------
def _mlp_kernel(x_ref, w1_ref, b1_ref, w2_ref, b2_ref, w3_ref, b3_ref, o_ref):
    # bf16 operands into the MXU, f32 accumulation; bias/ReLU stay f32 (VPU).
    h = jnp.dot(x_ref[...], w1_ref[...],
                preferred_element_type=jnp.float32) + b1_ref[...]
    h = jnp.maximum(h, 0.0)
    h = jnp.dot(h.astype(jnp.bfloat16), w2_ref[...],
                preferred_element_type=jnp.float32) + b2_ref[...]
    h = jnp.maximum(h, 0.0)
    y = jnp.dot(h.astype(jnp.bfloat16), w3_ref[...],
                preferred_element_type=jnp.float32) + b3_ref[...]
    o_ref[...] = y.astype(o_ref.dtype)


def _build_call(bm, mp, d0, d1, d2, d3, out_dtype, vmem_bytes, single_buffer):
    if single_buffer:
        def const_spec(shape):
            return pl.BlockSpec(shape, lambda i: (0, 0),
                                pipeline_mode=pl.Buffered(1))
    else:
        def const_spec(shape):
            return pl.BlockSpec(shape, lambda i: (0, 0))

    return pl.pallas_call(
        _mlp_kernel,
        out_shape=jax.ShapeDtypeStruct((mp, d3), out_dtype),
        grid_spec=pltpu.PrefetchScalarGridSpec(
            num_scalar_prefetch=0,
            grid=(mp // bm,),
            in_specs=[
                pl.BlockSpec((bm, d0), lambda i: (i, 0)),   # activations (bf16)
                const_spec((d0, d1)),                       # w1 (VMEM-resident)
                const_spec((1, d1)),                        # b1
                const_spec((d1, d2)),                       # w2
                const_spec((1, d2)),                        # b2
                const_spec((d2, d3)),                       # w3
                const_spec((1, d3)),                        # b3
            ],
            out_specs=pl.BlockSpec((bm, d3), lambda i: (i, 0)),
        ),
        compiler_params=pltpu.CompilerParams(
            dimension_semantics=("parallel",),
            vmem_limit_bytes=int(vmem_bytes),
        ),
    )


# ----------------------------------------------------------------------------
# One-time parameter prep: pad feature dims to 128 lanes, cast weights to bf16
# ----------------------------------------------------------------------------
def prep_params(params):
    """params: w1 (ind,h1), b1 (1,h1), w2 (h1,h2), b2 (1,h2), w3 (h2,od),
    b3 (1,od) -- weights already in (in, out) layout."""
    ind, h1 = params["w1"].shape
    h2 = params["w2"].shape[1]
    od = params["w3"].shape[1]
    d0, d1, d2, d3 = (_round_up(d, 128) for d in (ind, h1, h2, od))
    return {
        "w1": _pad_cast(params["w1"], d0, d1, jnp.bfloat16),
        "b1": _pad_cast(params["b1"], 1, d1, jnp.float32),
        "w2": _pad_cast(params["w2"], d1, d2, jnp.bfloat16),
        "b2": _pad_cast(params["b2"], 1, d2, jnp.float32),
        "w3": _pad_cast(params["w3"], d2, d3, jnp.bfloat16),
        "b3": _pad_cast(params["b3"], 1, d3, jnp.float32),
        "dims": (ind, h1, h2, od, d0, d1, d2, d3),
    }


# ----------------------------------------------------------------------------
# Forward wrapper
# ----------------------------------------------------------------------------
def mlp_forward(x, prepped, out_dtype=jnp.float32):
    ind, h1, h2, od, d0, d1, d2, d3 = prepped["dims"]
    *lead, xin = x.shape
    assert xin == ind, f"input feature dim {xin} != {ind}"

    x2 = x.reshape(-1, ind).astype(jnp.bfloat16)
    M = x2.shape[0]

    cap = _vmem_cap()
    bm = _choose_block_m(M, d0, d1, d2, d3, cap)
    mp = _round_up(M, bm)
    if (M, ind) != (mp, d0):
        x2 = jnp.pad(x2, ((0, mp - M), (0, d0 - ind)))

    vmem_bytes = min(_vmem_budget(bm, d0, d1, d2, d3), cap)
    args = (x2, prepped["w1"], prepped["b1"], prepped["w2"], prepped["b2"],
            prepped["w3"], prepped["b3"])
    try:
        out = _build_call(bm, mp, d0, d1, d2, d3, out_dtype,
                          vmem_bytes, single_buffer=True)(*args)
    except Exception:
        # Fallback: default (double) buffering if Buffered(1) is unsupported.
        vmem_bytes = min(_vmem_budget(bm, d0, d1, d2, d3, weight_bufs=2), cap)
        out = _build_call(bm, mp, d0, d1, d2, d3, out_dtype,
                          vmem_bytes, single_buffer=False)(*args)

    if (mp, d3) != (M, od):
        out = out[:M, :od]
    return out.reshape(*lead, od)


# ----------------------------------------------------------------------------
# Pure-JAX f32 reference (same math as the PyTorch module)
# ----------------------------------------------------------------------------
def _reference(x, params):
    h = jnp.maximum(x @ params["w1"] + params["b1"], 0.0)
    h = jnp.maximum(h @ params["w2"] + params["b2"], 0.0)
    return h @ params["w3"] + params["b3"]


def make_params(key, ind, h1, h2, od):
    """PyTorch nn.Linear default init, weights stored pre-transposed (in, out)."""
    ks = jax.random.split(key, 6)

    def u(k, shape, fan_in):
        s = 1.0 / math.sqrt(fan_in)
        return jax.random.uniform(k, shape, jnp.float32, -s, s)

    return {
        "w1": u(ks[0], (ind, h1), ind), "b1": u(ks[1], (1, h1), ind),
        "w2": u(ks[2], (h1, h2), h1),   "b2": u(ks[3], (1, h2), h1),
        "w3": u(ks[4], (h2, od), h2),   "b3": u(ks[5], (1, od), h2),
    }


if __name__ == "__main__":
    IND, H1, H2, OD = 32, 64, 64, 16
    key = jax.random.PRNGKey(0)
    kx, kp = jax.random.split(key)

    # (4, 8, 32): leading dims flatten to 32 rows -> one 32-row block, grid=(1,).
    x = jax.random.normal(kx, (4, 8, IND), jnp.float32)
    params = make_params(kp, IND, H1, H2, OD)
    prepped = prep_params(params)          # one-time pad + bf16 cast

    out = mlp_forward(x, prepped)
    out = jax.block_until_ready(out)

    ref = _reference(x, params)
    assert out.shape == (4, 8, OD)
    # bf16 MXU operands with f32 accumulation -> ~1e-2 relative tolerance.
    assert jnp.allclose(out, ref, rtol=2e-2, atol=2e-2), "mismatch vs reference"

    print("KERNEL_OK")
</pallas_src>

<mosaic_0001>
module attributes {stable_mosaic.version = 11 : i64} {
  func.func @_mlp_kernel(%arg0: i32, %arg1: memref<32x128xbf16, #tpu.memory_space<vmem>>, %arg2: memref<128x128xbf16, #tpu.memory_space<vmem>>, %arg3: memref<1x128xf32, #tpu.memory_space<vmem>>, %arg4: memref<128x128xbf16, #tpu.memory_space<vmem>>, %arg5: memref<1x128xf32, #tpu.memory_space<vmem>>, %arg6: memref<128x128xbf16, #tpu.memory_space<vmem>>, %arg7: memref<1x128xf32, #tpu.memory_space<vmem>>, %arg8: memref<32x128xf32, #tpu.memory_space<vmem>>) attributes {dimension_semantics = [#tpu.dimension_semantics<parallel>], iteration_bounds = array<i64: 1>, scalar_prefetch = 0 : i64, scratch_operands = 0 : i64, tpu.core_type = #tpu.core_type<tc>, window_params = [{transform_indices = @transform_0, window_bounds = array<i64: 32, 128>}, {pipeline_mode = #tpu.pipeline_mode<synchronous>, transform_indices = @transform_1, window_bounds = array<i64: 128, 128>}, {pipeline_mode = #tpu.pipeline_mode<synchronous>, transform_indices = @transform_2, window_bounds = array<i64: 1, 128>}, {pipeline_mode = #tpu.pipeline_mode<synchronous>, transform_indices = @transform_3, window_bounds = array<i64: 128, 128>}, {pipeline_mode = #tpu.pipeline_mode<synchronous>, transform_indices = @transform_4, window_bounds = array<i64: 1, 128>}, {pipeline_mode = #tpu.pipeline_mode<synchronous>, transform_indices = @transform_5, window_bounds = array<i64: 128, 128>}, {pipeline_mode = #tpu.pipeline_mode<synchronous>, transform_indices = @transform_6, window_bounds = array<i64: 1, 128>}, {transform_indices = @transform_7, window_bounds = array<i64: 32, 128>}]} {
    %c0 = arith.constant 0 : index
    %c0_0 = arith.constant 0 : index
    %0 = vector.load %arg1[%c0, %c0_0] : memref<32x128xbf16, #tpu.memory_space<vmem>>, vector<32x128xbf16>
    %c0_1 = arith.constant 0 : index
    %c0_2 = arith.constant 0 : index
    %1 = vector.load %arg2[%c0_1, %c0_2] : memref<128x128xbf16, #tpu.memory_space<vmem>>, vector<128x128xbf16>
    %cst = arith.constant dense<0.000000e+00> : vector<32x128xf32>
    %2 = tpu.matmul %0, %1, %cst {dimension_numbers = #tpu.dot_dimension_numbers<[1], [0], [0], [1], [0, 0, 1, 1], [], []>} : vector<32x128xbf16>, vector<128x128xbf16>, vector<32x128xf32> -> vector<32x128xf32>
    %c0_3 = arith.constant 0 : index
    %c0_4 = arith.constant 0 : index
    %3 = vector.load %arg3[%c0_3, %c0_4] : memref<1x128xf32, #tpu.memory_space<vmem>>, vector<1x128xf32>
    %4 = vector.broadcast %3 : vector<1x128xf32> to vector<32x128xf32>
    %5 = arith.addf %2, %4 : vector<32x128xf32>
    %cst_5 = arith.constant 0.000000e+00 : f32
    %6 = vector.broadcast %cst_5 : f32 to vector<32x128xf32>
    %7 = arith.maximumf %5, %6 : vector<32x128xf32>
    %8 = arith.truncf %7 : vector<32x128xf32> to vector<32x128xbf16>
    %c0_6 = arith.constant 0 : index
    %c0_7 = arith.constant 0 : index
    %9 = vector.load %arg4[%c0_6, %c0_7] : memref<128x128xbf16, #tpu.memory_space<vmem>>, vector<128x128xbf16>
    %cst_8 = arith.constant dense<0.000000e+00> : vector<32x128xf32>
    %10 = tpu.matmul %8, %9, %cst_8 {dimension_numbers = #tpu.dot_dimension_numbers<[1], [0], [0], [1], [0, 0, 1, 1], [], []>} : vector<32x128xbf16>, vector<128x128xbf16>, vector<32x128xf32> -> vector<32x128xf32>
    %c0_9 = arith.constant 0 : index
    %c0_10 = arith.constant 0 : index
    %11 = vector.load %arg5[%c0_9, %c0_10] : memref<1x128xf32, #tpu.memory_space<vmem>>, vector<1x128xf32>
    %12 = vector.broadcast %11 : vector<1x128xf32> to vector<32x128xf32>
    %13 = arith.addf %10, %12 : vector<32x128xf32>
    %cst_11 = arith.constant 0.000000e+00 : f32
    %14 = vector.broadcast %cst_11 : f32 to vector<32x128xf32>
    %15 = arith.maximumf %13, %14 : vector<32x128xf32>
    %16 = arith.truncf %15 : vector<32x128xf32> to vector<32x128xbf16>
    %c0_12 = arith.constant 0 : index
    %c0_13 = arith.constant 0 : index
    %17 = vector.load %arg6[%c0_12, %c0_13] : memref<128x128xbf16, #tpu.memory_space<vmem>>, vector<128x128xbf16>
    %cst_14 = arith.constant dense<0.000000e+00> : vector<32x128xf32>
    %18 = tpu.matmul %16, %17, %cst_14 {dimension_numbers = #tpu.dot_dimension_numbers<[1], [0], [0], [1], [0, 0, 1, 1], [], []>} : vector<32x128xbf16>, vector<128x128xbf16>, vector<32x128xf32> -> vector<32x128xf32>
    %c0_15 = arith.constant 0 : index
    %c0_16 = arith.constant 0 : index
    %19 = vector.load %arg7[%c0_15, %c0_16] : memref<1x128xf32, #tpu.memory_space<vmem>>, vector<1x128xf32>
    %20 = vector.broadcast %19 : vector<1x128xf32> to vector<32x128xf32>
    %21 = arith.addf %18, %20 : vector<32x128xf32>
    %c0_17 = arith.constant 0 : index
    %c0_18 = arith.constant 0 : index
    %22 = vector.load %arg8[%c0_17, %c0_18] : memref<32x128xf32, #tpu.memory_space<vmem>>, vector<32x128xf32>
    tpu.vector_store %arg8[%c0_17, %c0_18], %21 {strides = array<i32>} : memref<32x128xf32, #tpu.memory_space<vmem>>, vector<32x128xf32>,
    return
  }
  func.func @transform_0(%arg0: i32) -> (i32, i32) {
    %c0_i32 = arith.constant 0 : i32
    %c0_i32_0 = arith.constant 0 : i32
    return %arg0, %c0_i32 : i32, i32
  }
  func.func @transform_1(%arg0: i32) -> (i32, i32) {
    %c0_i32 = arith.constant 0 : i32
    %c0_i32_0 = arith.constant 0 : i32
    %c0_i32_1 = arith.constant 0 : i32
    return %c0_i32, %c0_i32_0 : i32, i32
  }
  func.func @transform_2(%arg0: i32) -> (i32, i32) {
    %c0_i32 = arith.constant 0 : i32
    %c0_i32_0 = arith.constant 0 : i32
    %c0_i32_1 = arith.constant 0 : i32
    return %c0_i32, %c0_i32_0 : i32, i32
  }
  func.func @transform_3(%arg0: i32) -> (i32, i32) {
    %c0_i32 = arith.constant 0 : i32
    %c0_i32_0 = arith.constant 0 : i32
    %c0_i32_1 = arith.constant 0 : i32
    return %c0_i32, %c0_i32_0 : i32, i32
  }
  func.func @transform_4(%arg0: i32) -> (i32, i32) {
    %c0_i32 = arith.constant 0 : i32
    %c0_i32_0 = arith.constant 0 : i32
    %c0_i32_1 = arith.constant 0 : i32
    return %c0_i32, %c0_i32_0 : i32, i32
  }
  func.func @transform_5(%arg0: i32) -> (i32, i32) {
    %c0_i32 = arith.constant 0 : i32
    %c0_i32_0 = arith.constant 0 : i32
    %c0_i32_1 = arith.constant 0 : i32
    return %c0_i32, %c0_i32_0 : i32, i32
  }
  func.func @transform_6(%arg0: i32) -> (i32, i32) {
    %c0_i32 = arith.constant 0 : i32
    %c0_i32_0 = arith.constant 0 : i32
    %c0_i32_1 = arith.constant 0 : i32
    return %c0_i32, %c0_i32_0 : i32, i32
  }
  func.func @transform_7(%arg0: i32) -> (i32, i32) {
    %c0_i32 = arith.constant 0 : i32
    %c0_i32_0 = arith.constant 0 : i32
    return %arg0, %c0_i32 : i32, i32
  }
}

module attributes {stable_mosaic.version = 11 : i64} {
  func.func @_mlp_kernel(%arg0: i32, %arg1: memref<32x128xbf16, #tpu.memory_space<vmem>>, %arg2: memref<128x128xbf16, #tpu.memory_space<vmem>>, %arg3: memref<1x128xf32, #tpu.memory_space<vmem>>, %arg4: memref<128x128xbf16, #tpu.memory_space<vmem>>, %arg5: memref<1x128xf32, #tpu.memory_space<vmem>>, %arg6: memref<128x128xbf16, #tpu.memory_space<vmem>>, %arg7: memref<1x128xf32, #tpu.memory_space<vmem>>, %arg8: memref<32x128xf32, #tpu.memory_space<vmem>>) attributes {dimension_semantics = [#tpu.dimension_semantics<parallel>], iteration_bounds = array<i64: 1>, scalar_prefetch = 0 : i64, scratch_operands = 0 : i64, tpu.core_type = #tpu.core_type<tc>, window_params = [{transform_indices = @transform_0, window_bounds = array<i64: 32, 128>}, {pipeline_mode = #tpu.pipeline_mode<synchronous>, transform_indices = @transform_1, window_bounds = array<i64: 128, 128>}, {pipeline_mode = #tpu.pipeline_mode<synchronous>, transform_indices = @transform_2, window_bounds = array<i64: 1, 128>}, {pipeline_mode = #tpu.pipeline_mode<synchronous>, transform_indices = @transform_3, window_bounds = array<i64: 128, 128>}, {pipeline_mode = #tpu.pipeline_mode<synchronous>, transform_indices = @transform_4, window_bounds = array<i64: 1, 128>}, {pipeline_mode = #tpu.pipeline_mode<synchronous>, transform_indices = @transform_5, window_bounds = array<i64: 128, 128>}, {pipeline_mode = #tpu.pipeline_mode<synchronous>, transform_indices = @transform_6, window_bounds = array<i64: 1, 128>}, {transform_indices = @transform_7, window_bounds = array<i64: 32, 128>}]} {
    %c0 = arith.constant 0 : index
    %c0_0 = arith.constant 0 : index
    %0 = vector.load %arg1[%c0, %c0_0] : memref<32x128xbf16, #tpu.memory_space<vmem>>, vector<32x128xbf16>
    %c0_1 = arith.constant 0 : index
    %c0_2 = arith.constant 0 : index
    %1 = vector.load %arg2[%c0_1, %c0_2] : memref<128x128xbf16, #tpu.memory_space<vmem>>, vector<128x128xbf16>
    %cst = arith.constant dense<0.000000e+00> : vector<32x128xf32>
    %2 = tpu.matmul %0, %1, %cst {dimension_numbers = #tpu.dot_dimension_numbers<[1], [0], [0], [1], [0, 0, 1, 1], [], []>} : vector<32x128xbf16>, vector<128x128xbf16>, vector<32x128xf32> -> vector<32x128xf32>
    %c0_3 = arith.constant 0 : index
    %c0_4 = arith.constant 0 : index
    %3 = vector.load %arg3[%c0_3, %c0_4] : memref<1x128xf32, #tpu.memory_space<vmem>>, vector<1x128xf32>
    %4 = vector.broadcast %3 : vector<1x128xf32> to vector<32x128xf32>
    %5 = arith.addf %2, %4 : vector<32x128xf32>
    %cst_5 = arith.constant 0.000000e+00 : f32
    %6 = vector.broadcast %cst_5 : f32 to vector<32x128xf32>
    %7 = arith.maximumf %5, %6 : vector<32x128xf32>
    %8 = arith.truncf %7 : vector<32x128xf32> to vector<32x128xbf16>
    %c0_6 = arith.constant 0 : index
    %c0_7 = arith.constant 0 : index
    %9 = vector.load %arg4[%c0_6, %c0_7] : memref<128x128xbf16, #tpu.memory_space<vmem>>, vector<128x128xbf16>
    %cst_8 = arith.constant dense<0.000000e+00> : vector<32x128xf32>
    %10 = tpu.matmul %8, %9, %cst_8 {dimension_numbers = #tpu.dot_dimension_numbers<[1], [0], [0], [1], [0, 0, 1, 1], [], []>} : vector<32x128xbf16>, vector<128x128xbf16>, vector<32x128xf32> -> vector<32x128xf32>
    %c0_9 = arith.constant 0 : index
    %c0_10 = arith.constant 0 : index
    %11 = vector.load %arg5[%c0_9, %c0_10] : memref<1x128xf32, #tpu.memory_space<vmem>>, vector<1x128xf32>
    %12 = vector.broadcast %11 : vector<1x128xf32> to vector<32x128xf32>
    %13 = arith.addf %10, %12 : vector<32x128xf32>
    %cst_11 = arith.constant 0.000000e+00 : f32
    %14 = vector.broadcast %cst_11 : f32 to vector<32x128xf32>
    %15 = arith.maximumf %13, %14 : vector<32x128xf32>
    %16 = arith.truncf %15 : vector<32x128xf32> to vector<32x128xbf16>
    %c0_12 = arith.constant 0 : index
    %c0_13 = arith.constant 0 : index
    %17 = vector.load %arg6[%c0_12, %c0_13] : memref<128x128xbf16, #tpu.memory_space<vmem>>, vector<128x128xbf16>
    %cst_14 = arith.constant dense<0.000000e+00> : vector<32x128xf32>
    %18 = tpu.matmul %16, %17, %cst_14 {dimension_numbers = #tpu.dot_dimension_numbers<[1], [0], [0], [1], [0, 0, 1, 1], [], []>} : vector<32x128xbf16>, vector<128x128xbf16>, vector<32x128xf32> -> vector<32x128xf32>
    %c0_15 = arith.constant 0 : index
    %c0_16 = arith.constant 0 : index
    %19 = vector.load %arg7[%c0_15, %c0_16] : memref<1x128xf32, #tpu.memory_space<vmem>>, vector<1x128xf32>
    %20 = vector.broadcast %19 : vector<1x128xf32> to vector<32x128xf32>
    %21 = arith.addf %18, %20 : vector<32x128xf32>
    %c0_17 = arith.constant 0 : index
    %c0_18 = arith.constant 0 : index
    %22 = vector.load %arg8[%c0_17, %c0_18] : memref<32x128xf32, #tpu.memory_space<vmem>>, vector<32x128xf32>
    tpu.vector_store %arg8[%c0_17, %c0_18], %21 {strides = array<i32>} : memref<32x128xf32, #tpu.memory_space<vmem>>, vector<32x128xf32>,
    return
  }
  func.func @transform_0(%arg0: i32) -> (i32, i32) {
    %c0_i32 = arith.constant 0 : i32
    %c0_i32_0 = arith.constant 0 : i32
    return %arg0, %c0_i32 : i32, i32
  }
  func.func @transform_1(%arg0: i32) -> (i32, i32) {
    %c0_i32 = arith.constant 0 : i32
    %c0_i32_0 = arith.constant 0 : i32
    %c0_i32_1 = arith.constant 0 : i32
    return %c0_i32, %c0_i32_0 : i32, i32
  }
  func.func @transform_2(%arg0: i32) -> (i32, i32) {
    %c0_i32 = arith.constant 0 : i32
    %c0_i32_0 = arith.constant 0 : i32
    %c0_i32_1 = arith.constant 0 : i32
    return %c0_i32, %c0_i32_0 : i32, i32
  }
  func.func @transform_3(%arg0: i32) -> (i32, i32) {
    %c0_i32 = arith.constant 0 : i32
    %c0_i32_0 = arith.constant 0 : i32
    %c0_i32_1 = arith.constant 0 : i32
    return %c0_i32, %c0_i32_0 : i32, i32
  }
  func.func @transform_4(%arg0: i32) -> (i32, i32) {
    %c0_i32 = arith.constant 0 : i32
    %c0_i32_0 = arith.constant 0 : i32
    %c0_i32_1 = arith.constant 0 : i32
    return %c0_i32, %c0_i32_0 : i32, i32
  }
  func.func @transform_5(%arg0: i32) -> (i32, i32) {
    %c0_i32 = arith.constant 0 : i32
    %c0_i32_0 = arith.constant 0 : i32
    %c0_i32_1 = arith.constant 0 : i32
    return %c0_i32, %c0_i32_0 : i32, i32
  }
  func.func @transform_6(%arg0: i32) -> (i32, i32) {
    %c0_i32 = arith.constant 0 : i32
    %c0_i32_0 = arith.constant 0 : i32
    %c0_i32_1 = arith.constant 0 : i32
    return %c0_i32, %c0_i32_0 : i32, i32
  }
  func.func @transform_7(%arg0: i32) -> (i32, i32) {
    %c0_i32 = arith.constant 0 : i32
    %c0_i32_0 = arith.constant 0 : i32
    return %arg0, %c0_i32 : i32, i32
  }
}

</mosaic_0001>

<llo_original>
// kernel: tpu_custom_call.1
$region0: #{tpu_custom_call.1}
  #allocation0 [shape = 'u32[]', space=smem, size = 0x4, offset = 0x4, fixed_abs, tag = 'smem constant byte address 0x4 - core index']
  #allocation1 [shape = 'u32[144,128]{1,0:T(1,128)}', space=vmem, size = 0x12000, scoped, tag = 'internal scratch']
  %s0 = inlined_call_operand.hbm [shape: bf16[32,128], index: 0, kind: input, shape index: {}]
  %s1 = inlined_call_operand.hbm [shape: bf16[128,128], index: 1, kind: input, shape index: {}]
  %s2 = inlined_call_operand.vmem [shape: f32[1,128], index: 2, kind: input, shape index: {}]
  %s3 = inlined_call_operand.hbm [shape: bf16[128,128], index: 3, kind: input, shape index: {}]
  %s4 = inlined_call_operand.vmem [shape: f32[1,128], index: 4, kind: input, shape index: {}]
  %s5 = inlined_call_operand.hbm [shape: bf16[128,128], index: 5, kind: input, shape index: {}]
  %s6 = inlined_call_operand.vmem [shape: f32[1,128], index: 6, kind: input, shape index: {}]
  %s7 = inlined_call_operand.hbm [shape: f32[32,128], index: 7, kind: output, shape index: {}]
  %s8 = sld [smem:[#allocation0]]
  $region54: #{tpu_custom_call.1} parent=0
    _
  %s10 = ssub.s32 1, %s8
  %s11 = scalar_select 0, %s10, %s8
  $region1: #{tpu_custom_call.1} parent=0
    #allocation2 [shape = 'u8[8192]{0}', space=vmem, size = 0x2000, scoped, tag = 'input window, operand 0, single buffered']
    #allocation3 [shape = 's32[1]{0}', space=sflag, size = 0x4, scoped, tag = 'scoped memory for tpu_custom_call.1']
    #allocation4 [shape = 's32[1]{0}', space=sflag, size = 0x4, scoped, tag = 'scoped memory for tpu_custom_call.1']
    #allocation5 [shape = 'u8[32768]{0}', space=vmem, size = 0x8000, scoped, tag = 'input window, operand 1, single buffered']
    #allocation6 [shape = 's32[1]{0}', space=sflag, size = 0x4, scoped, tag = 'scoped memory for tpu_custom_call.1']
    #allocation7 [shape = 'u8[32768]{0}', space=vmem, size = 0x8000, scoped, tag = 'input window, operand 3, single buffered']
    #allocation8 [shape = 'u8[32768]{0}', space=vmem, size = 0x8000, scoped, tag = 'input window, operand 5, single buffered']
    #allocation9 [shape = 's32[1]{0}', space=sflag, size = 0x4, scoped, tag = 'scoped memory for tpu_custom_call.1']
    #allocation10 [shape = 'u8[16384]{0}', space=vmem, size = 0x4000, scoped, tag = 'output window, operand 0, single buffered']
    %12 = vsyncpa [#allocation3], 0
    %13 = vsyncpa [#allocation6], 0
    %14 = vsyncpa [#allocation9], 0
    %15 = vsyncpa [#allocation4], 0
    // Predicated region
    $region2: #{tpu_custom_call.1} parent=1 // pred_check
      _
    $region3: #{tpu_custom_call.1} parent=1 // pred_check_branch
      %17 = sbr.rel (0) target = $region5
    $region4: #{tpu_custom_call.1} parent=1 // pred_region
      %s19 = ssub.s32 256, 256
      %20 = vsyncadd [#allocation3], %s19
      %s21 = sshll.u32 [#allocation2], 4
      %s22 = int_to_ptr.vmem [resolvable:$true] %s21
      %27 = dma.hbm_to_vmem [thread:$0]  %s0, 256, %s22, [#allocation3], 64, 64, 4
    $region5: #{tpu_custom_call.1} parent=1 // pred_fallthru
      _
    // Predicated region
    $region6: #{tpu_custom_call.1} parent=1 // pred_check
      _
    $region7: #{tpu_custom_call.1} parent=1 // pred_check_branch
      %29 = sbr.rel (0) target = $region9
    $region8: #{tpu_custom_call.1} parent=1 // pred_region
      %s31 = ssub.s32 1024, 1024
      %32 = vsyncadd [#allocation6], %s31
      %s33 = sshll.u32 [#allocation5], 4
      %s34 = int_to_ptr.vmem [resolvable:$true] %s33
      %39 = dma.hbm_to_vmem [thread:$0]  %s1, 1024, %s34, [#allocation6], 64, 64, 4
    $region9: #{tpu_custom_call.1} parent=1 // pred_fallthru
      _
    // Predicated region
    $region10: #{tpu_custom_call.1} parent=1 // pred_check
      _
    $region11: #{tpu_custom_call.1} parent=1 // pred_check_branch
      %41 = sbr.rel (0) target = $region13
    $region12: #{tpu_custom_call.1} parent=1 // pred_region
      _
    $region13: #{tpu_custom_call.1} parent=1 // pred_fallthru
      _
    // Predicated region
    $region14: #{tpu_custom_call.1} parent=1 // pred_check
      _
    $region15: #{tpu_custom_call.1} parent=1 // pred_check_branch
      %43 = sbr.rel (0) target = $region17
    $region16: #{tpu_custom_call.1} parent=1 // pred_region
      %s45 = ssub.s32 1024, 1024
      %46 = vsyncadd [#allocation6], %s45
      %s47 = sshll.u32 [#allocation7], 4
      %s48 = int_to_ptr.vmem [resolvable:$true] %s47
      %53 = dma.hbm_to_vmem [thread:$0]  %s3, 1024, %s48, [#allocation6], 64, 64, 4
    $region17: #{tpu_custom_call.1} parent=1 // pred_fallthru
      _
    // Predicated region
    $region18: #{tpu_custom_call.1} parent=1 // pred_check
      _
    $region19: #{tpu_custom_call.1} parent=1 // pred_check_branch
      %55 = sbr.rel (0) target = $region21
    $region20: #{tpu_custom_call.1} parent=1 // pred_region
      _
    $region21: #{tpu_custom_call.1} parent=1 // pred_fallthru
      _
    // Predicated region
    $region22: #{tpu_custom_call.1} parent=1 // pred_check
      _
    $region23: #{tpu_custom_call.1} parent=1 // pred_check_branch
      %57 = sbr.rel (0) target = $region25
    $region24: #{tpu_custom_call.1} parent=1 // pred_region
      %s59 = ssub.s32 1024, 1024
      %60 = vsyncadd [#allocation9], %s59
      %s61 = sshll.u32 [#allocation8], 4
      %s62 = int_to_ptr.vmem [resolvable:$true] %s61
      %67 = dma.hbm_to_vmem [thread:$0]  %s5, 1024, %s62, [#allocation9], 64, 64, 4
    $region25: #{tpu_custom_call.1} parent=1 // pred_fallthru
      _
    // Predicated region
    $region26: #{tpu_custom_call.1} parent=1 // pred_check
      _
    $region27: #{tpu_custom_call.1} parent=1 // pred_check_branch
      %69 = sbr.rel (0) target = $region29
    $region28: #{tpu_custom_call.1} parent=1 // pred_region
      _
    $region29: #{tpu_custom_call.1} parent=1 // pred_fallthru
      _
    // Predicated region
    $region30: #{tpu_custom_call.1} parent=1 // pred_check
      _
    $region31: #{tpu_custom_call.1} parent=1 // pred_check_branch
      %71 = sbr.rel (0) target = $region33
    $region32: #{tpu_custom_call.1} parent=1 // pred_region
      %72 = dma.done [#allocation3], 256
    $region33: #{tpu_custom_call.1} parent=1 // pred_fallthru
      _
    // Predicated region
    $region34: #{tpu_custom_call.1} parent=1 // pred_check
      _
    $region35: #{tpu_custom_call.1} parent=1 // pred_check_branch
      %74 = sbr.rel (0) target = $region37
    $region36: #{tpu_custom_call.1} parent=1 // pred_region
      %75 = dma.done [#allocation6], 1024
    $region37: #{tpu_custom_call.1} parent=1 // pred_fallthru
      _
    // Predicated region
    $region38: #{tpu_custom_call.1} parent=1 // pred_check
      _
    $region39: #{tpu_custom_call.1} parent=1 // pred_check_branch
      %77 = sbr.rel (0) target = $region41
    $region40: #{tpu_custom_call.1} parent=1 // pred_region
      %78 = dma.done [#allocation6], 1024
    $region41: #{tpu_custom_call.1} parent=1 // pred_fallthru
      _
    // Predicated region
    $region42: #{tpu_custom_call.1} parent=1 // pred_check
      _
    $region43: #{tpu_custom_call.1} parent=1 // pred_check_branch
      %80 = sbr.rel (0) target = $region45
    $region44: #{tpu_custom_call.1} parent=1 // pred_region
      %81 = dma.done [#allocation9], 1024
    $region45: #{tpu_custom_call.1} parent=1 // pred_fallthru
      _
    %v83 = vld [vmem:[#allocation2] sm:$0xf]
    %v84 = vld [vmem:[#allocation2 + $0x4] sm:$0xf]
    %v85 = vld [vmem:[#allocation2 + $0x8] sm:$0xf]
    %v86 = vld [vmem:[#allocation2 + $0xc] sm:$0xf]
    %v87 = vld [vmem:[#allocation5] sm:$0xf]
    %v88 = vld [vmem:[#allocation5 + $0x4] sm:$0xf]
    %v89 = vld [vmem:[#allocation5 + $0x8] sm:$0xf]
    %v90 = vld [vmem:[#allocation5 + $0xc] sm:$0xf]
    %v91 = vld [vmem:[#allocation5 + $0x10] sm:$0xf]
    %v92 = vld [vmem:[#allocation5 + $0x14] sm:$0xf]
    %v93 = vld [vmem:[#allocation5 + $0x18] sm:$0xf]
    %v94 = vld [vmem:[#allocation5 + $0x1c] sm:$0xf]
    %v95 = vld [vmem:[#allocation5 + $0x20] sm:$0xf]
    %v96 = vld [vmem:[#allocation5 + $0x24] sm:$0xf]
    %v97 = vld [vmem:[#allocation5 + $0x28] sm:$0xf]
    %v98 = vld [vmem:[#allocation5 + $0x2c] sm:$0xf]
    %v99 = vld [vmem:[#allocation5 + $0x30] sm:$0xf]
    %v100 = vld [vmem:[#allocation5 + $0x34] sm:$0xf]
    %v101 = vld [vmem:[#allocation5 + $0x38] sm:$0xf]
    %v102 = vld [vmem:[#allocation5 + $0x3c] sm:$0xf]
    %v103 = vld [vmem:[%s2] sm:$0x1]
    %v105 = vlaneseq
    %v106 = vshrl.u32 %v105, 7
    %v107 = vsub.s32 0, %v106
    %v108 = vrot.slane %v103, %v107
    %v114 = vunpack.c.l.b16 %v83
    %v115 = vunpack.c.l.b16 %v84
    %v116 = vunpack.c.l.b16 %v85
    %v117 = vunpack.c.l.b16 %v86
    %v118 = vpack.c.b16 %v115, %v114
    %v119 = vpack.c.b16 %v117, %v116
    %v138 = vunpack.c.l.b16 %v87
    %v139 = vunpack.c.l.b16 %v88
    %v140 = vunpack.c.l.b16 %v89
    %v141 = vunpack.c.l.b16 %v90
    %v142 = vunpack.c.l.b16 %v91
    %v143 = vunpack.c.l.b16 %v92
    %v144 = vunpack.c.l.b16 %v93
    %v145 = vunpack.c.l.b16 %v94
    %v146 = vunpack.c.l.b16 %v95
    %v147 = vunpack.c.l.b16 %v96
    %v148 = vunpack.c.l.b16 %v97
    %v149 = vunpack.c.l.b16 %v98
    %v150 = vunpack.c.l.b16 %v99
    %v151 = vunpack.c.l.b16 %v100
    %v152 = vunpack.c.l.b16 %v101
    %v153 = vunpack.c.l.b16 %v102
    %v154 = vpack.c.b16 %v139, %v138
    %v155 = vpack.c.b16 %v141, %v140
    %v156 = vpack.c.b16 %v143, %v142
    %v157 = vpack.c.b16 %v145, %v144
    %v158 = vpack.c.b16 %v147, %v146
    %v159 = vpack.c.b16 %v149, %v148
    %v160 = vpack.c.b16 %v151, %v150
    %v161 = vpack.c.b16 %v153, %v152
    %170 = vmatprep.subr.bf16.mxu0 0
    %171 = vmatpush1.bf16.msra.mxu0 %v154
    %172 = vmatprep.subr.bf16.mxu0 0
    %173 = vmatpush1.bf16.msra.mxu0 %v155
    %174 = vmatprep.subr.bf16.mxu0 0
    %175 = vmatpush1.bf16.msra.mxu0 %v156
    %176 = vmatprep.subr.bf16.mxu0 0
    %177 = vmatpush1.bf16.msra.mxu0 %v157
    %178 = vmatprep.subr.bf16.mxu0 0
    %179 = vmatpush1.bf16.msra.mxu0 %v158
    %180 = vmatprep.subr.bf16.mxu0 0
    %181 = vmatpush1.bf16.msra.mxu0 %v159
    %182 = vmatprep.subr.bf16.mxu0 0
    %183 = vmatpush1.bf16.msra.mxu0 %v160
    %184 = vmatprep.subr.bf16.mxu0 0
    %185 = vmatpush1.bf16.msra.mxu0 %v161
    %186 = vmatprep.subr.bf16.mxu0 0
    %187 = vmatpush1.bf16.msra.mxu0 0
    %188 = vmatprep.subr.bf16.mxu0 0
    %189 = vmatpush1.bf16.msra.mxu0 0
    %190 = vmatprep.subr.bf16.mxu0 0
    %191 = vmatpush1.bf16.msra.mxu0 0
    %192 = vmatprep.subr.bf16.mxu0 0
    %193 = vmatpush1.bf16.msra.mxu0 0
    %194 = vmatprep.subr.bf16.mxu0 0
    %195 = vmatpush1.bf16.msra.mxu0 0
    %196 = vmatprep.subr.bf16.mxu0 0
    %197 = vmatpush1.bf16.msra.mxu0 0
    %198 = vmatprep.subr.bf16.mxu0 0
    %199 = vmatpush1.bf16.msra.mxu0 0
    %200 = vmatprep.subr.bf16.mxu0 0
    %201 = vmatpush1.bf16.msra.mxu0 0
    %202 = vmatprep.mubr.bf16.mxu0 0
    %203 = vmatmul.mubr.bf16.gmra.mrb[0].mxu0 %v118
    %v204 = vpop.f32.mrb[0].mxu0
    %v205 = vadd.f32 %v108, %v204
    %v206 = vpop.f32.mrb[0].mxu0
    %v207 = vpop.f32.mrb[0].mxu0
    %v208 = vadd.f32 %v108, %v207
    %v209 = vpop.f32.mrb[0].mxu0
    %210 = vmatprep.mubr.bf16.mxu0 0
    %211 = vmatmul.mubr.bf16.gmra.mrb[0].mxu0 %v119
    %v212 = vpop.f32.mrb[0].mxu0
    %v213 = vadd.f32 %v108, %v212
    %v214 = vpop.f32.mrb[0].mxu0
    %v215 = vpop.f32.mrb[0].mxu0
    %v216 = vadd.f32 %v108, %v215
    %v217 = vpop.f32.mrb[0].mxu0
    %218 = vdwg.mxu0
    %v219 = vmax.f32 %v205, 0.0
    %v220 = vmax.f32 %v208, 0.0
    %v221 = vmax.f32 %v213, 0.0
    %v222 = vmax.f32 %v216, 0.0
    %v223 = vpack.c.bf16 %v220, %v219
    %v224 = vpack.c.bf16 %v222, %v221
    %v225 = vld [vmem:[#allocation7] sm:$0xf]
    %v226 = vld [vmem:[#allocation7 + $0x4] sm:$0xf]
    %v227 = vld [vmem:[#allocation7 + $0x8] sm:$0xf]
    %v228 = vld [vmem:[#allocation7 + $0xc] sm:$0xf]
    %v229 = vld [vmem:[#allocation7 + $0x10] sm:$0xf]
    %v230 = vld [vmem:[#allocation7 + $0x14] sm:$0xf]
    %v231 = vld [vmem:[#allocation7 + $0x18] sm:$0xf]
    %v232 = vld [vmem:[#allocation7 + $0x1c] sm:$0xf]
    %v233 = vld [vmem:[#allocation7 + $0x20] sm:$0xf]
    %v234 = vld [vmem:[#allocation7 + $0x24] sm:$0xf]
    %v235 = vld [vmem:[#allocation7 + $0x28] sm:$0xf]
    %v236 = vld [vmem:[#allocation7 + $0x2c] sm:$0xf]
    %v237 = vld [vmem:[#allocation7 + $0x30] sm:$0xf]
    %v238 = vld [vmem:[#allocation7 + $0x34] sm:$0xf]
    %v239 = vld [vmem:[#allocation7 + $0x38] sm:$0xf]
    %v240 = vld [vmem:[#allocation7 + $0x3c] sm:$0xf]
    %v241 = vld [vmem:[%s4] sm:$0x1]
    %v243 = vlaneseq
    %v244 = vshrl.u32 %v243, 7
    %v245 = vsub.s32 0, %v244
    %v246 = vrot.slane %v241, %v245
    %v264 = vunpack.c.l.b16 %v225
    %v265 = vunpack.c.l.b16 %v226
    %v266 = vunpack.c.l.b16 %v227
    %v267 = vunpack.c.l.b16 %v228
    %v268 = vunpack.c.l.b16 %v229
    %v269 = vunpack.c.l.b16 %v230
    %v270 = vunpack.c.l.b16 %v231
    %v271 = vunpack.c.l.b16 %v232
    %v272 = vunpack.c.l.b16 %v233
    %v273 = vunpack.c.l.b16 %v234
    %v274 = vunpack.c.l.b16 %v235
    %v275 = vunpack.c.l.b16 %v236
    %v276 = vunpack.c.l.b16 %v237
    %v277 = vunpack.c.l.b16 %v238
    %v278 = vunpack.c.l.b16 %v239
    %v279 = vunpack.c.l.b16 %v240
    %v280 = vpack.c.b16 %v265, %v264
    %v281 = vpack.c.b16 %v267, %v266
    %v282 = vpack.c.b16 %v269, %v268
    %v283 = vpack.c.b16 %v271, %v270
    %v284 = vpack.c.b16 %v273, %v272
    %v285 = vpack.c.b16 %v275, %v274
    %v286 = vpack.c.b16 %v277, %v276
    %v287 = vpack.c.b16 %v279, %v278
    %296 = vmatprep.subr.bf16.mxu0 0
    %297 = vmatpush1.bf16.msra.mxu0 %v280
    %298 = vmatprep.subr.bf16.mxu0 0
    %299 = vmatpush1.bf16.msra.mxu0 %v281
    %300 = vmatprep.subr.bf16.mxu0 0
    %301 = vmatpush1.bf16.msra.mxu0 %v282
    %302 = vmatprep.subr.bf16.mxu0 0
    %303 = vmatpush1.bf16.msra.mxu0 %v283
    %304 = vmatprep.subr.bf16.mxu0 0
    %305 = vmatpush1.bf16.msra.mxu0 %v284
    %306 = vmatprep.subr.bf16.mxu0 0
    %307 = vmatpush1.bf16.msra.mxu0 %v285
    %308 = vmatprep.subr.bf16.mxu0 0
    %309 = vmatpush1.bf16.msra.mxu0 %v286
    %310 = vmatprep.subr.bf16.mxu0 0
    %311 = vmatpush1.bf16.msra.mxu0 %v287
    %312 = vmatprep.subr.bf16.mxu0 0
    %313 = vmatpush1.bf16.msra.mxu0 0
    %314 = vmatprep.subr.bf16.mxu0 0
    %315 = vmatpush1.bf16.msra.mxu0 0
    %316 = vmatprep.subr.bf16.mxu0 0
    %317 = vmatpush1.bf16.msra.mxu0 0
    %318 = vmatprep.subr.bf16.mxu0 0
    %319 = vmatpush1.bf16.msra.mxu0 0
    %320 = vmatprep.subr.bf16.mxu0 0
    %321 = vmatpush1.bf16.msra.mxu0 0
    %322 = vmatprep.subr.bf16.mxu0 0
    %323 = vmatpush1.bf16.msra.mxu0 0
    %324 = vmatprep.subr.bf16.mxu0 0
    %325 = vmatpush1.bf16.msra.mxu0 0
    %326 = vmatprep.subr.bf16.mxu0 0
    %327 = vmatpush1.bf16.msra.mxu0 0
    %328 = vmatprep.mubr.bf16.mxu0 0
    %329 = vmatmul.mubr.bf16.gmra.mrb[0].mxu0 %v223
    %v330 = vpop.f32.mrb[0].mxu0
    %v331 = vadd.f32 %v246, %v330
    %v332 = vpop.f32.mrb[0].mxu0
    %v333 = vpop.f32.mrb[0].mxu0
    %v334 = vadd.f32 %v246, %v333
    %v335 = vpop.f32.mrb[0].mxu0
    %336 = vmatprep.mubr.bf16.mxu0 0
    %337 = vmatmul.mubr.bf16.gmra.mrb[0].mxu0 %v224
    %v338 = vpop.f32.mrb[0].mxu0
    %v339 = vadd.f32 %v246, %v338
    %v340 = vpop.f32.mrb[0].mxu0
    %v341 = vpop.f32.mrb[0].mxu0
    %v342 = vadd.f32 %v246, %v341
    %v343 = vpop.f32.mrb[0].mxu0
    %344 = vdwg.mxu0
    %v345 = vmax.f32 %v331, 0.0
    %v346 = vmax.f32 %v334, 0.0
    %v347 = vmax.f32 %v339, 0.0
    %v348 = vmax.f32 %v342, 0.0
    %v349 = vpack.c.bf16 %v346, %v345
    %v350 = vpack.c.bf16 %v348, %v347
    %v351 = vld [vmem:[#allocation8] sm:$0xf]
    %v352 = vld [vmem:[#allocation8 + $0x4] sm:$0xf]
    %v353 = vld [vmem:[#allocation8 + $0x8] sm:$0xf]
    %v354 = vld [vmem:[#allocation8 + $0xc] sm:$0xf]
    %v355 = vld [vmem:[#allocation8 + $0x10] sm:$0xf]
    %v356 = vld [vmem:[#allocation8 + $0x14] sm:$0xf]
    %v357 = vld [vmem:[#allocation8 + $0x18] sm:$0xf]
    %v358 = vld [vmem:[#allocation8 + $0x1c] sm:$0xf]
    %v359 = vld [vmem:[#allocation8 + $0x20] sm:$0xf]
    %v360 = vld [vmem:[#allocation8 + $0x24] sm:$0xf]
    %v361 = vld [vmem:[#allocation8 + $0x28] sm:$0xf]
    %v362 = vld [vmem:[#allocation8 + $0x2c] sm:$0xf]
    %v363 = vld [vmem:[#allocation8 + $0x30] sm:$0xf]
    %v364 = vld [vmem:[#allocation8 + $0x34] sm:$0xf]
    %v365 = vld [vmem:[#allocation8 + $0x38] sm:$0xf]
    %v366 = vld [vmem:[#allocation8 + $0x3c] sm:$0xf]
    %v367 = vld [vmem:[%s6] sm:$0x1]
    %v369 = vlaneseq
    %v370 = vshrl.u32 %v369, 7
    %v371 = vsub.s32 0, %v370
    %v372 = vrot.slane %v367, %v371
    %v390 = vunpack.c.l.b16 %v351
    %v391 = vunpack.c.l.b16 %v352
    %v392 = vunpack.c.l.b16 %v353
    %v393 = vunpack.c.l.b16 %v354
    %v394 = vunpack.c.l.b16 %v355
    %v395 = vunpack.c.l.b16 %v356
    %v396 = vunpack.c.l.b16 %v357
    %v397 = vunpack.c.l.b16 %v358
    %v398 = vunpack.c.l.b16 %v359
    %v399 = vunpack.c.l.b16 %v360
    %v400 = vunpack.c.l.b16 %v361
    %v401 = vunpack.c.l.b16 %v362
    %v402 = vunpack.c.l.b16 %v363
    %v403 = vunpack.c.l.b16 %v364
    %v404 = vunpack.c.l.b16 %v365
    %v405 = vunpack.c.l.b16 %v366
    %v406 = vpack.c.b16 %v391, %v390
    %v407 = vpack.c.b16 %v393, %v392
    %v408 = vpack.c.b16 %v395, %v394
    %v409 = vpack.c.b16 %v397, %v396
    %v410 = vpack.c.b16 %v399, %v398
    %v411 = vpack.c.b16 %v401, %v400
    %v412 = vpack.c.b16 %v403, %v402
    %v413 = vpack.c.b16 %v405, %v404
    %422 = vmatprep.subr.bf16.mxu0 0
    %423 = vmatpush1.bf16.msra.mxu0 %v406
    %424 = vmatprep.subr.bf16.mxu0 0
    %425 = vmatpush1.bf16.msra.mxu0 %v407
    %426 = vmatprep.subr.bf16.mxu0 0
    %427 = vmatpush1.bf16.msra.mxu0 %v408
    %428 = vmatprep.subr.bf16.mxu0 0
    %429 = vmatpush1.bf16.msra.mxu0 %v409
    %430 = vmatprep.subr.bf16.mxu0 0
    %431 = vmatpush1.bf16.msra.mxu0 %v410
    %432 = vmatprep.subr.bf16.mxu0 0
    %433 = vmatpush1.bf16.msra.mxu0 %v411
    %434 = vmatprep.subr.bf16.mxu0 0
    %435 = vmatpush1.bf16.msra.mxu0 %v412
    %436 = vmatprep.subr.bf16.mxu0 0
    %437 = vmatpush1.bf16.msra.mxu0 %v413
    %438 = vmatprep.subr.bf16.mxu0 0
    %439 = vmatpush1.bf16.msra.mxu0 0
    %440 = vmatprep.subr.bf16.mxu0 0
    %441 = vmatpush1.bf16.msra.mxu0 0
    %442 = vmatprep.subr.bf16.mxu0 0
    %443 = vmatpush1.bf16.msra.mxu0 0
    %444 = vmatprep.subr.bf16.mxu0 0
    %445 = vmatpush1.bf16.msra.mxu0 0
    %446 = vmatprep.subr.bf16.mxu0 0
    %447 = vmatpush1.bf16.msra.mxu0 0
    %448 = vmatprep.subr.bf16.mxu0 0
    %449 = vmatpush1.bf16.msra.mxu0 0
    %450 = vmatprep.subr.bf16.mxu0 0
    %451 = vmatpush1.bf16.msra.mxu0 0
    %452 = vmatprep.subr.bf16.mxu0 0
    %453 = vmatpush1.bf16.msra.mxu0 0
    %454 = vmatprep.mubr.bf16.mxu0 0
    %455 = vmatmul.mubr.bf16.gmra.mrb[0].mxu0 %v349
    %v456 = vpop.f32.mrb[0].mxu0
    %v457 = vadd.f32 %v372, %v456
    %v458 = vpop.f32.mrb[0].mxu0
    %v459 = vpop.f32.mrb[0].mxu0
    %v460 = vadd.f32 %v372, %v459
    %v461 = vpop.f32.mrb[0].mxu0
    %462 = vmatprep.mubr.bf16.mxu0 0
    %463 = vmatmul.mubr.bf16.gmra.mrb[0].mxu0 %v350
    %v464 = vpop.f32.mrb[0].mxu0
    %v465 = vadd.f32 %v372, %v464
    %v466 = vpop.f32.mrb[0].mxu0
    %v467 = vpop.f32.mrb[0].mxu0
    %v468 = vadd.f32 %v372, %v467
    %v469 = vpop.f32.mrb[0].mxu0
    %470 = vdwg.mxu0
    %471 = vst [vmem:[#allocation10] sm:$0xff] %v457
    %472 = vst [vmem:[#allocation10 + $0x8] sm:$0xff] %v460
    %473 = vst [vmem:[#allocation10 + $0x10] sm:$0xff] %v465
    %474 = vst [vmem:[#allocation10 + $0x18] sm:$0xff] %v468
    // Predicated region
    $region46: #{tpu_custom_call.1} parent=1 // pred_check
      _
    $region47: #{tpu_custom_call.1} parent=1 // pred_check_branch
      %476 = sbr.rel (0) target = $region49
    $region48: #{tpu_custom_call.1} parent=1 // pred_region
      %s478 = ssub.s32 512, 512
      %479 = vsyncadd [#allocation4], %s478
      %s480 = sshll.u32 [#allocation10], 4
      %s481 = int_to_ptr.vmem [resolvable:$true] %s480
      %486 = dma.vmem_to_hbm [thread:$0]  %s481, 512, %s7, [#allocation4], 128, 128, 8
    $region49: #{tpu_custom_call.1} parent=1 // pred_fallthru
      _
    // Predicated region
    $region50: #{tpu_custom_call.1} parent=1 // pred_check
      _
    $region51: #{tpu_custom_call.1} parent=1 // pred_check_branch
      %488 = sbr.rel (0) target = $region53
    $region52: #{tpu_custom_call.1} parent=1 // pred_region
      %489 = dma.done [#allocation4], 512
    $region53: #{tpu_custom_call.1} parent=1 // pred_fallthru
      _
    %490 = vsyncpa [#allocation3], 1
    %491 = vsyncpa [#allocation6], 1
    %492 = vsyncpa [#allocation9], 1
    %493 = vsyncpa [#allocation4], 1

// kernel: tpu_custom_call.1
$region0: #{tpu_custom_call.1}
  #allocation0 [shape = 'u32[]', space=smem, size = 0x4, offset = 0x4, fixed_abs, tag = 'smem constant byte address 0x4 - core index']
  #allocation1 [shape = 'u32[144,128]{1,0:T(1,128)}', space=vmem, size = 0x12000, scoped, tag = 'internal scratch']
  %s0 = inlined_call_operand.hbm [shape: bf16[32,128], index: 0, kind: input, shape index: {}]
  %s1 = inlined_call_operand.hbm [shape: bf16[128,128], index: 1, kind: input, shape index: {}]
  %s2 = inlined_call_operand.vmem [shape: f32[1,128], index: 2, kind: input, shape index: {}]
  %s3 = inlined_call_operand.hbm [shape: bf16[128,128], index: 3, kind: input, shape index: {}]
  %s4 = inlined_call_operand.vmem [shape: f32[1,128], index: 4, kind: input, shape index: {}]
  %s5 = inlined_call_operand.hbm [shape: bf16[128,128], index: 5, kind: input, shape index: {}]
  %s6 = inlined_call_operand.vmem [shape: f32[1,128], index: 6, kind: input, shape index: {}]
  %s7 = inlined_call_operand.hbm [shape: f32[32,128], index: 7, kind: output, shape index: {}]
  %s8 = sld [smem:[#allocation0]]
  $region54: #{tpu_custom_call.1} parent=0
    _
  %s10 = ssub.s32 1, %s8
  %s11 = scalar_select 0, %s10, %s8
  $region1: #{tpu_custom_call.1} parent=0
    #allocation2 [shape = 'u8[8192]{0}', space=vmem, size = 0x2000, scoped, tag = 'input window, operand 0, single buffered']
    #allocation3 [shape = 's32[1]{0}', space=sflag, size = 0x4, scoped, tag = 'scoped memory for tpu_custom_call.1']
    #allocation4 [shape = 's32[1]{0}', space=sflag, size = 0x4, scoped, tag = 'scoped memory for tpu_custom_call.1']
    #allocation5 [shape = 'u8[32768]{0}', space=vmem, size = 0x8000, scoped, tag = 'input window, operand 1, single buffered']
    #allocation6 [shape = 's32[1]{0}', space=sflag, size = 0x4, scoped, tag = 'scoped memory for tpu_custom_call.1']
    #allocation7 [shape = 'u8[32768]{0}', space=vmem, size = 0x8000, scoped, tag = 'input window, operand 3, single buffered']
    #allocation8 [shape = 'u8[32768]{0}', space=vmem, size = 0x8000, scoped, tag = 'input window, operand 5, single buffered']
    #allocation9 [shape = 's32[1]{0}', space=sflag, size = 0x4, scoped, tag = 'scoped memory for tpu_custom_call.1']
    #allocation10 [shape = 'u8[16384]{0}', space=vmem, size = 0x4000, scoped, tag = 'output window, operand 0, single buffered']
    %12 = vsyncpa [#allocation3], 0
    %13 = vsyncpa [#allocation6], 0
    %14 = vsyncpa [#allocation9], 0
    %15 = vsyncpa [#allocation4], 0
    // Predicated region
    $region2: #{tpu_custom_call.1} parent=1 // pred_check
      _
    $region3: #{tpu_custom_call.1} parent=1 // pred_check_branch
      %17 = sbr.rel (0) target = $region5
    $region4: #{tpu_custom_call.1} parent=1 // pred_region
      %s19 = ssub.s32 256, 256
      %20 = vsyncadd [#allocation3], %s19
      %s21 = sshll.u32 [#allocation2], 4
      %s22 = int_to_ptr.vmem [resolvable:$true] %s21
      %27 = dma.hbm_to_vmem [thread:$0]  %s0, 256, %s22, [#allocation3], 64, 64, 4
    $region5: #{tpu_custom_call.1} parent=1 // pred_fallthru
      _
    // Predicated region
    $region6: #{tpu_custom_call.1} parent=1 // pred_check
      _
    $region7: #{tpu_custom_call.1} parent=1 // pred_check_branch
      %29 = sbr.rel (0) target = $region9
    $region8: #{tpu_custom_call.1} parent=1 // pred_region
      %s31 = ssub.s32 1024, 1024
      %32 = vsyncadd [#allocation6], %s31
      %s33 = sshll.u32 [#allocation5], 4
      %s34 = int_to_ptr.vmem [resolvable:$true] %s33
      %39 = dma.hbm_to_vmem [thread:$0]  %s1, 1024, %s34, [#allocation6], 64, 64, 4
    $region9: #{tpu_custom_call.1} parent=1 // pred_fallthru
      _
    // Predicated region
    $region10: #{tpu_custom_call.1} parent=1 // pred_check
      _
    $region11: #{tpu_custom_call.1} parent=1 // pred_check_branch
      %41 = sbr.rel (0) target = $region13
    $region12: #{tpu_custom_call.1} parent=1 // pred_region
      _
    $region13: #{tpu_custom_call.1} parent=1 // pred_fallthru
      _
    // Predicated region
    $region14: #{tpu_custom_call.1} parent=1 // pred_check
      _
    $region15: #{tpu_custom_call.1} parent=1 // pred_check_branch
      %43 = sbr.rel (0) target = $region17
    $region16: #{tpu_custom_call.1} parent=1 // pred_region
      %s45 = ssub.s32 1024, 1024
      %46 = vsyncadd [#allocation6], %s45
      %s47 = sshll.u32 [#allocation7], 4
      %s48 = int_to_ptr.vmem [resolvable:$true] %s47
      %53 = dma.hbm_to_vmem [thread:$0]  %s3, 1024, %s48, [#allocation6], 64, 64, 4
    $region17: #{tpu_custom_call.1} parent=1 // pred_fallthru
      _
    // Predicated region
    $region18: #{tpu_custom_call.1} parent=1 // pred_check
      _
    $region19: #{tpu_custom_call.1} parent=1 // pred_check_branch
      %55 = sbr.rel (0) target = $region21
    $region20: #{tpu_custom_call.1} parent=1 // pred_region
      _
    $region21: #{tpu_custom_call.1} parent=1 // pred_fallthru
      _
    // Predicated region
    $region22: #{tpu_custom_call.1} parent=1 // pred_check
      _
    $region23: #{tpu_custom_call.1} parent=1 // pred_check_branch
      %57 = sbr.rel (0) target = $region25
    $region24: #{tpu_custom_call.1} parent=1 // pred_region
      %s59 = ssub.s32 1024, 1024
      %60 = vsyncadd [#allocation9], %s59
      %s61 = sshll.u32 [#allocation8], 4
      %s62 = int_to_ptr.vmem [resolvable:$true] %s61
      %67 = dma.hbm_to_vmem [thread:$0]  %s5, 1024, %s62, [#allocation9], 64, 64, 4
    $region25: #{tpu_custom_call.1} parent=1 // pred_fallthru
      _
    // Predicated region
    $region26: #{tpu_custom_call.1} parent=1 // pred_check
      _
    $region27: #{tpu_custom_call.1} parent=1 // pred_check_branch
      %69 = sbr.rel (0) target = $region29
    $region28: #{tpu_custom_call.1} parent=1 // pred_region
      _
    $region29: #{tpu_custom_call.1} parent=1 // pred_fallthru
      _
    // Predicated region
    $region30: #{tpu_custom_call.1} parent=1 // pred_check
      _
    $region31: #{tpu_custom_call.1} parent=1 // pred_check_branch
      %71 = sbr.rel (0) target = $region33
    $region32: #{tpu_custom_call.1} parent=1 // pred_region
      %72 = dma.done [#allocation3], 256
    $region33: #{tpu_custom_call.1} parent=1 // pred_fallthru
      _
    // Predicated region
    $region34: #{tpu_custom_call.1} parent=1 // pred_check
      _
    $region35: #{tpu_custom_call.1} parent=1 // pred_check_branch
      %74 = sbr.rel (0) target = $region37
    $region36: #{tpu_custom_call.1} parent=1 // pred_region
      %75 = dma.done [#allocation6], 1024
    $region37: #{tpu_custom_call.1} parent=1 // pred_fallthru
      _
    // Predicated region
    $region38: #{tpu_custom_call.1} parent=1 // pred_check
      _
    $region39: #{tpu_custom_call.1} parent=1 // pred_check_branch
      %77 = sbr.rel (0) target = $region41
    $region40: #{tpu_custom_call.1} parent=1 // pred_region
      %78 = dma.done [#allocation6], 1024
    $region41: #{tpu_custom_call.1} parent=1 // pred_fallthru
      _
    // Predicated region
    $region42: #{tpu_custom_call.1} parent=1 // pred_check
      _
    $region43: #{tpu_custom_call.1} parent=1 // pred_check_branch
      %80 = sbr.rel (0) target = $region45
    $region44: #{tpu_custom_call.1} parent=1 // pred_region
      %81 = dma.done [#allocation9], 1024
    $region45: #{tpu_custom_call.1} parent=1 // pred_fallthru
      _
    %v83 = vld [vmem:[#allocation2] sm:$0xf]
    %v84 = vld [vmem:[#allocation2 + $0x4] sm:$0xf]
    %v85 = vld [vmem:[#allocation2 + $0x8] sm:$0xf]
    %v86 = vld [vmem:[#allocation2 + $0xc] sm:$0xf]
    %v87 = vld [vmem:[#allocation5] sm:$0xf]
    %v88 = vld [vmem:[#allocation5 + $0x4] sm:$0xf]
    %v89 = vld [vmem:[#allocation5 + $0x8] sm:$0xf]
    %v90 = vld [vmem:[#allocation5 + $0xc] sm:$0xf]
    %v91 = vld [vmem:[#allocation5 + $0x10] sm:$0xf]
    %v92 = vld [vmem:[#allocation5 + $0x14] sm:$0xf]
    %v93 = vld [vmem:[#allocation5 + $0x18] sm:$0xf]
    %v94 = vld [vmem:[#allocation5 + $0x1c] sm:$0xf]
    %v95 = vld [vmem:[#allocation5 + $0x20] sm:$0xf]
    %v96 = vld [vmem:[#allocation5 + $0x24] sm:$0xf]
    %v97 = vld [vmem:[#allocation5 + $0x28] sm:$0xf]
    %v98 = vld [vmem:[#allocation5 + $0x2c] sm:$0xf]
    %v99 = vld [vmem:[#allocation5 + $0x30] sm:$0xf]
    %v100 = vld [vmem:[#allocation5 + $0x34] sm:$0xf]
    %v101 = vld [vmem:[#allocation5 + $0x38] sm:$0xf]
    %v102 = vld [vmem:[#allocation5 + $0x3c] sm:$0xf]
    %v103 = vld [vmem:[%s2] sm:$0x1]
    %v105 = vlaneseq
    %v106 = vshrl.u32 %v105, 7
    %v107 = vsub.s32 0, %v106
    %v108 = vrot.slane %v103, %v107
    %v114 = vunpack.c.l.b16 %v83
    %v115 = vunpack.c.l.b16 %v84
    %v116 = vunpack.c.l.b16 %v85
    %v117 = vunpack.c.l.b16 %v86
    %v118 = vpack.c.b16 %v115, %v114
    %v119 = vpack.c.b16 %v117, %v116
    %v138 = vunpack.c.l.b16 %v87
    %v139 = vunpack.c.l.b16 %v88
    %v140 = vunpack.c.l.b16 %v89
    %v141 = vunpack.c.l.b16 %v90
    %v142 = vunpack.c.l.b16 %v91
    %v143 = vunpack.c.l.b16 %v92
    %v144 = vunpack.c.l.b16 %v93
    %v145 = vunpack.c.l.b16 %v94
    %v146 = vunpack.c.l.b16 %v95
    %v147 = vunpack.c.l.b16 %v96
    %v148 = vunpack.c.l.b16 %v97
    %v149 = vunpack.c.l.b16 %v98
    %v150 = vunpack.c.l.b16 %v99
    %v151 = vunpack.c.l.b16 %v100
    %v152 = vunpack.c.l.b16 %v101
    %v153 = vunpack.c.l.b16 %v102
    %v154 = vpack.c.b16 %v139, %v138
    %v155 = vpack.c.b16 %v141, %v140
    %v156 = vpack.c.b16 %v143, %v142
    %v157 = vpack.c.b16 %v145, %v144
    %v158 = vpack.c.b16 %v147, %v146
    %v159 = vpack.c.b16 %v149, %v148
    %v160 = vpack.c.b16 %v151, %v150
    %v161 = vpack.c.b16 %v153, %v152
    %170 = vmatprep.subr.bf16.mxu0 0
    %171 = vmatpush1.bf16.msra.mxu0 %v154
    %172 = vmatprep.subr.bf16.mxu0 0
    %173 = vmatpush1.bf16.msra.mxu0 %v155
    %174 = vmatprep.subr.bf16.mxu0 0
    %175 = vmatpush1.bf16.msra.mxu0 %v156
    %176 = vmatprep.subr.bf16.mxu0 0
    %177 = vmatpush1.bf16.msra.mxu0 %v157
    %178 = vmatprep.subr.bf16.mxu0 0
    %179 = vmatpush1.bf16.msra.mxu0 %v158
    %180 = vmatprep.subr.bf16.mxu0 0
    %181 = vmatpush1.bf16.msra.mxu0 %v159
    %182 = vmatprep.subr.bf16.mxu0 0
    %183 = vmatpush1.bf16.msra.mxu0 %v160
    %184 = vmatprep.subr.bf16.mxu0 0
    %185 = vmatpush1.bf16.msra.mxu0 %v161
    %186 = vmatprep.subr.bf16.mxu0 0
    %187 = vmatpush1.bf16.msra.mxu0 0
    %188 = vmatprep.subr.bf16.mxu0 0
    %189 = vmatpush1.bf16.msra.mxu0 0
    %190 = vmatprep.subr.bf16.mxu0 0
    %191 = vmatpush1.bf16.msra.mxu0 0
    %192 = vmatprep.subr.bf16.mxu0 0
    %193 = vmatpush1.bf16.msra.mxu0 0
    %194 = vmatprep.subr.bf16.mxu0 0
    %195 = vmatpush1.bf16.msra.mxu0 0
    %196 = vmatprep.subr.bf16.mxu0 0
    %197 = vmatpush1.bf16.msra.mxu0 0
    %198 = vmatprep.subr.bf16.mxu0 0
    %199 = vmatpush1.bf16.msra.mxu0 0
    %200 = vmatprep.subr.bf16.mxu0 0
    %201 = vmatpush1.bf16.msra.mxu0 0
    %202 = vmatprep.mubr.bf16.mxu0 0
    %203 = vmatmul.mubr.bf16.gmra.mrb[0].mxu0 %v118
    %v204 = vpop.f32.mrb[0].mxu0
    %v205 = vadd.f32 %v108, %v204
    %v206 = vpop.f32.mrb[0].mxu0
    %v207 = vpop.f32.mrb[0].mxu0
    %v208 = vadd.f32 %v108, %v207
    %v209 = vpop.f32.mrb[0].mxu0
    %210 = vmatprep.mubr.bf16.mxu0 0
    %211 = vmatmul.mubr.bf16.gmra.mrb[0].mxu0 %v119
    %v212 = vpop.f32.mrb[0].mxu0
    %v213 = vadd.f32 %v108, %v212
    %v214 = vpop.f32.mrb[0].mxu0
    %v215 = vpop.f32.mrb[0].mxu0
    %v216 = vadd.f32 %v108, %v215
    %v217 = vpop.f32.mrb[0].mxu0
    %218 = vdwg.mxu0
    %v219 = vmax.f32 %v205, 0.0
    %v220 = vmax.f32 %v208, 0.0
    %v221 = vmax.f32 %v213, 0.0
    %v222 = vmax.f32 %v216, 0.0
    %v223 = vpack.c.bf16 %v220, %v219
    %v224 = vpack.c.bf16 %v222, %v221
    %v225 = vld [vmem:[#allocation7] sm:$0xf]
    %v226 = vld [vmem:[#allocation7 + $0x4] sm:$0xf]
    %v227 = vld [vmem:[#allocation7 + $0x8] sm:$0xf]
    %v228 = vld [vmem:[#allocation7 + $0xc] sm:$0xf]
    %v229 = vld [vmem:[#allocation7 + $0x10] sm:$0xf]
    %v230 = vld [vmem:[#allocation7 + $0x14] sm:$0xf]
    %v231 = vld [vmem:[#allocation7 + $0x18] sm:$0xf]
    %v232 = vld [vmem:[#allocation7 + $0x1c] sm:$0xf]
    %v233 = vld [vmem:[#allocation7 + $0x20] sm:$0xf]
    %v234 = vld [vmem:[#allocation7 + $0x24] sm:$0xf]
    %v235 = vld [vmem:[#allocation7 + $0x28] sm:$0xf]
    %v236 = vld [vmem:[#allocation7 + $0x2c] sm:$0xf]
    %v237 = vld [vmem:[#allocation7 + $0x30] sm:$0xf]
    %v238 = vld [vmem:[#allocation7 + $0x34] sm:$0xf]
    %v239 = vld [vmem:[#allocation7 + $0x38] sm:$0xf]
    %v240 = vld [vmem:[#allocation7 + $0x3c] sm:$0xf]
    %v241 = vld [vmem:[%s4] sm:$0x1]
    %v243 = vlaneseq
    %v244 = vshrl.u32 %v243, 7
    %v245 = vsub.s32 0, %v244
    %v246 = vrot.slane %v241, %v245
    %v264 = vunpack.c.l.b16 %v225
    %v265 = vunpack.c.l.b16 %v226
    %v266 = vunpack.c.l.b16 %v227
    %v267 = vunpack.c.l.b16 %v228
    %v268 = vunpack.c.l.b16 %v229
    %v269 = vunpack.c.l.b16 %v230
    %v270 = vunpack.c.l.b16 %v231
    %v271 = vunpack.c.l.b16 %v232
    %v272 = vunpack.c.l.b16 %v233
    %v273 = vunpack.c.l.b16 %v234
    %v274 = vunpack.c.l.b16 %v235
    %v275 = vunpack.c.l.b16 %v236
    %v276 = vunpack.c.l.b16 %v237
    %v277 = vunpack.c.l.b16 %v238
    %v278 = vunpack.c.l.b16 %v239
    %v279 = vunpack.c.l.b16 %v240
    %v280 = vpack.c.b16 %v265, %v264
    %v281 = vpack.c.b16 %v267, %v266
    %v282 = vpack.c.b16 %v269, %v268
    %v283 = vpack.c.b16 %v271, %v270
    %v284 = vpack.c.b16 %v273, %v272
    %v285 = vpack.c.b16 %v275, %v274
    %v286 = vpack.c.b16 %v277, %v276
    %v287 = vpack.c.b16 %v279, %v278
    %296 = vmatprep.subr.bf16.mxu0 0
    %297 = vmatpush1.bf16.msra.mxu0 %v280
    %298 = vmatprep.subr.bf16.mxu0 0
    %299 = vmatpush1.bf16.msra.mxu0 %v281
    %300 = vmatprep.subr.bf16.mxu0 0
    %301 = vmatpush1.bf16.msra.mxu0 %v282
    %302 = vmatprep.subr.bf16.mxu0 0
    %303 = vmatpush1.bf16.msra.mxu0 %v283
    %304 = vmatprep.subr.bf16.mxu0 0
    %305 = vmatpush1.bf16.msra.mxu0 %v284
    %306 = vmatprep.subr.bf16.mxu0 0
    %307 = vmatpush1.bf16.msra.mxu0 %v285
    %308 = vmatprep.subr.bf16.mxu0 0
    %309 = vmatpush1.bf16.msra.mxu0 %v286
    %310 = vmatprep.subr.bf16.mxu0 0
    %311 = vmatpush1.bf16.msra.mxu0 %v287
    %312 = vmatprep.subr.bf16.mxu0 0
    %313 = vmatpush1.bf16.msra.mxu0 0
    %314 = vmatprep.subr.bf16.mxu0 0
    %315 = vmatpush1.bf16.msra.mxu0 0
    %316 = vmatprep.subr.bf16.mxu0 0
    %317 = vmatpush1.bf16.msra.mxu0 0
    %318 = vmatprep.subr.bf16.mxu0 0
    %319 = vmatpush1.bf16.msra.mxu0 0
    %320 = vmatprep.subr.bf16.mxu0 0
    %321 = vmatpush1.bf16.msra.mxu0 0
    %322 = vmatprep.subr.bf16.mxu0 0
    %323 = vmatpush1.bf16.msra.mxu0 0
    %324 = vmatprep.subr.bf16.mxu0 0
    %325 = vmatpush1.bf16.msra.mxu0 0
    %326 = vmatprep.subr.bf16.mxu0 0
    %327 = vmatpush1.bf16.msra.mxu0 0
    %328 = vmatprep.mubr.bf16.mxu0 0
    %329 = vmatmul.mubr.bf16.gmra.mrb[0].mxu0 %v223
    %v330 = vpop.f32.mrb[0].mxu0
    %v331 = vadd.f32 %v246, %v330
    %v332 = vpop.f32.mrb[0].mxu0
    %v333 = vpop.f32.mrb[0].mxu0
    %v334 = vadd.f32 %v246, %v333
    %v335 = vpop.f32.mrb[0].mxu0
    %336 = vmatprep.mubr.bf16.mxu0 0
    %337 = vmatmul.mubr.bf16.gmra.mrb[0].mxu0 %v224
    %v338 = vpop.f32.mrb[0].mxu0
    %v339 = vadd.f32 %v246, %v338
    %v340 = vpop.f32.mrb[0].mxu0
    %v341 = vpop.f32.mrb[0].mxu0
    %v342 = vadd.f32 %v246, %v341
    %v343 = vpop.f32.mrb[0].mxu0
    %344 = vdwg.mxu0
    %v345 = vmax.f32 %v331, 0.0
    %v346 = vmax.f32 %v334, 0.0
    %v347 = vmax.f32 %v339, 0.0
    %v348 = vmax.f32 %v342, 0.0
    %v349 = vpack.c.bf16 %v346, %v345
    %v350 = vpack.c.bf16 %v348, %v347
    %v351 = vld [vmem:[#allocation8] sm:$0xf]
    %v352 = vld [vmem:[#allocation8 + $0x4] sm:$0xf]
    %v353 = vld [vmem:[#allocation8 + $0x8] sm:$0xf]
    %v354 = vld [vmem:[#allocation8 + $0xc] sm:$0xf]
    %v355 = vld [vmem:[#allocation8 + $0x10] sm:$0xf]
    %v356 = vld [vmem:[#allocation8 + $0x14] sm:$0xf]
    %v357 = vld [vmem:[#allocation8 + $0x18] sm:$0xf]
    %v358 = vld [vmem:[#allocation8 + $0x1c] sm:$0xf]
    %v359 = vld [vmem:[#allocation8 + $0x20] sm:$0xf]
    %v360 = vld [vmem:[#allocation8 + $0x24] sm:$0xf]
    %v361 = vld [vmem:[#allocation8 + $0x28] sm:$0xf]
    %v362 = vld [vmem:[#allocation8 + $0x2c] sm:$0xf]
    %v363 = vld [vmem:[#allocation8 + $0x30] sm:$0xf]
    %v364 = vld [vmem:[#allocation8 + $0x34] sm:$0xf]
    %v365 = vld [vmem:[#allocation8 + $0x38] sm:$0xf]
    %v366 = vld [vmem:[#allocation8 + $0x3c] sm:$0xf]
    %v367 = vld [vmem:[%s6] sm:$0x1]
    %v369 = vlaneseq
    %v370 = vshrl.u32 %v369, 7
    %v371 = vsub.s32 0, %v370
    %v372 = vrot.slane %v367, %v371
    %v390 = vunpack.c.l.b16 %v351
    %v391 = vunpack.c.l.b16 %v352
    %v392 = vunpack.c.l.b16 %v353
    %v393 = vunpack.c.l.b16 %v354
    %v394 = vunpack.c.l.b16 %v355
    %v395 = vunpack.c.l.b16 %v356
    %v396 = vunpack.c.l.b16 %v357
    %v397 = vunpack.c.l.b16 %v358
    %v398 = vunpack.c.l.b16 %v359
    %v399 = vunpack.c.l.b16 %v360
    %v400 = vunpack.c.l.b16 %v361
    %v401 = vunpack.c.l.b16 %v362
    %v402 = vunpack.c.l.b16 %v363
    %v403 = vunpack.c.l.b16 %v364
    %v404 = vunpack.c.l.b16 %v365
    %v405 = vunpack.c.l.b16 %v366
    %v406 = vpack.c.b16 %v391, %v390
    %v407 = vpack.c.b16 %v393, %v392
    %v408 = vpack.c.b16 %v395, %v394
    %v409 = vpack.c.b16 %v397, %v396
    %v410 = vpack.c.b16 %v399, %v398
    %v411 = vpack.c.b16 %v401, %v400
    %v412 = vpack.c.b16 %v403, %v402
    %v413 = vpack.c.b16 %v405, %v404
    %422 = vmatprep.subr.bf16.mxu0 0
    %423 = vmatpush1.bf16.msra.mxu0 %v406
    %424 = vmatprep.subr.bf16.mxu0 0
    %425 = vmatpush1.bf16.msra.mxu0 %v407
    %426 = vmatprep.subr.bf16.mxu0 0
    %427 = vmatpush1.bf16.msra.mxu0 %v408
    %428 = vmatprep.subr.bf16.mxu0 0
    %429 = vmatpush1.bf16.msra.mxu0 %v409
    %430 = vmatprep.subr.bf16.mxu0 0
    %431 = vmatpush1.bf16.msra.mxu0 %v410
    %432 = vmatprep.subr.bf16.mxu0 0
    %433 = vmatpush1.bf16.msra.mxu0 %v411
    %434 = vmatprep.subr.bf16.mxu0 0
    %435 = vmatpush1.bf16.msra.mxu0 %v412
    %436 = vmatprep.subr.bf16.mxu0 0
    %437 = vmatpush1.bf16.msra.mxu0 %v413
    %438 = vmatprep.subr.bf16.mxu0 0
    %439 = vmatpush1.bf16.msra.mxu0 0
    %440 = vmatprep.subr.bf16.mxu0 0
    %441 = vmatpush1.bf16.msra.mxu0 0
    %442 = vmatprep.subr.bf16.mxu0 0
    %443 = vmatpush1.bf16.msra.mxu0 0
    %444 = vmatprep.subr.bf16.mxu0 0
    %445 = vmatpush1.bf16.msra.mxu0 0
    %446 = vmatprep.subr.bf16.mxu0 0
    %447 = vmatpush1.bf16.msra.mxu0 0
    %448 = vmatprep.subr.bf16.mxu0 0
    %449 = vmatpush1.bf16.msra.mxu0 0
    %450 = vmatprep.subr.bf16.mxu0 0
    %451 = vmatpush1.bf16.msra.mxu0 0
    %452 = vmatprep.subr.bf16.mxu0 0
    %453 = vmatpush1.bf16.msra.mxu0 0
    %454 = vmatprep.mubr.bf16.mxu0 0
    %455 = vmatmul.mubr.bf16.gmra.mrb[0].mxu0 %v349
    %v456 = vpop.f32.mrb[0].mxu0
    %v457 = vadd.f32 %v372, %v456
    %v458 = vpop.f32.mrb[0].mxu0
    %v459 = vpop.f32.mrb[0].mxu0
    %v460 = vadd.f32 %v372, %v459
    %v461 = vpop.f32.mrb[0].mxu0
    %462 = vmatprep.mubr.bf16.mxu0 0
    %463 = vmatmul.mubr.bf16.gmra.mrb[0].mxu0 %v350
    %v464 = vpop.f32.mrb[0].mxu0
    %v465 = vadd.f32 %v372, %v464
    %v466 = vpop.f32.mrb[0].mxu0
    %v467 = vpop.f32.mrb[0].mxu0
    %v468 = vadd.f32 %v372, %v467
    %v469 = vpop.f32.mrb[0].mxu0
    %470 = vdwg.mxu0
    %471 = vst [vmem:[#allocation10] sm:$0xff] %v457
    %472 = vst [vmem:[#allocation10 + $0x8] sm:$0xff] %v460
    %473 = vst [vmem:[#allocation10 + $0x10] sm:$0xff] %v465
    %474 = vst [vmem:[#allocation10 + $0x18] sm:$0xff] %v468
    // Predicated region
    $region46: #{tpu_custom_call.1} parent=1 // pred_check
      _
    $region47: #{tpu_custom_call.1} parent=1 // pred_check_branch
      %476 = sbr.rel (0) target = $region49
    $region48: #{tpu_custom_call.1} parent=1 // pred_region
      %s478 = ssub.s32 512, 512
      %479 = vsyncadd [#allocation4], %s478
      %s480 = sshll.u32 [#allocation10], 4
      %s481 = int_to_ptr.vmem [resolvable:$true] %s480
      %486 = dma.vmem_to_hbm [thread:$0]  %s481, 512, %s7, [#allocation4], 128, 128, 8
    $region49: #{tpu_custom_call.1} parent=1 // pred_fallthru
      _
    // Predicated region
    $region50: #{tpu_custom_call.1} parent=1 // pred_check
      _
    $region51: #{tpu_custom_call.1} parent=1 // pred_check_branch
      %488 = sbr.rel (0) target = $region53
    $region52: #{tpu_custom_call.1} parent=1 // pred_region
      %489 = dma.done [#allocation4], 512
    $region53: #{tpu_custom_call.1} parent=1 // pred_fallthru
      _
    %490 = vsyncpa [#allocation3], 1
    %491 = vsyncpa [#allocation6], 1
    %492 = vsyncpa [#allocation9], 1
    %493 = vsyncpa [#allocation4], 1

</llo_original>
